<compile_context>
chip_gen: v7x
topology: tpu7x:2x2x1
jax: 0.10.0
libtpu: 0.0.40
codegen_flags: <defaults>
</compile_context>

<pallas_src>
import jax
import jax.numpy as jnp
from jax.experimental import pallas as pl
from jax.experimental.pallas import tpu as pltpu

HIDDEN1_UNITS = 50
HIDDEN2_UNITS = 30

# Batch tile (multiple of 8 sublanes).  At tb=4096 the per-step VMEM footprint
# (bf16 inputs + f32 lane-padded intermediates, double-buffered) is ~10-12 MiB,
# comfortably under the 48 MiB limit set below on every generation.
MAX_BATCH_TILE = 4096
# Use >=2 grid steps whenever the batch allows it so ("parallel",) can feed
# both of v7x's TensorCores (no effect on single-core v5e/v6e).
MIN_GRID_TILES = 2


def _critic_kernel(b4_ref,            # SMEM (1,1): fc4 bias (scalar)
                   xa_ref,            # VMEM (tb, S+A) bf16: [x | a] tile
                   w_in_ref,          # VMEM (S+A, H1+H2) bf16: blockdiag(W1, Wa')
                   b1_ref,            # VMEM (1, H1+H2) f32: [b1 | 0]
                   w2_ref,            # VMEM (H1+H2, H2) bf16: [Wx' ; I]
                   b3_ref,            # VMEM (1, H2) f32: folded fc3 bias
                   w4_ref,            # VMEM (8, H2) bf16: row 0 = w4^T, rows 1..7 = 0
                   out_ref):          # VMEM (1, tb) f32: lane-dense Q row
    # --- Matmul 1 (MXU, bf16 operands, f32 accumulation) --------------------
    # [x | a] @ [[W1, 0], [0, Wa']]  ->  [ x@W1 | a@Wa' ]
    h = jnp.dot(xa_ref[...], w_in_ref[...], preferred_element_type=jnp.float32)
    h = h + b1_ref[...]                       # b1 on fc1 columns, 0 on a-columns
    # relu only on the fc1 columns; the action-path columns pass through.
    col = jax.lax.broadcasted_iota(jnp.int32, h.shape, 1)
    h = jnp.where(col < HIDDEN1_UNITS, jnp.maximum(h, 0.0), h)

    # --- Matmul 2 (MXU, bf16) ------------------------------------------------
    # [h1 | a_term] @ [[Wx'], [I]] = h1 @ Wx' + a_term   (exact algebraic fold
    # of fc21/fc22/concat/fc3 -- no nonlinearity between them).
    h3 = jnp.dot(h.astype(jnp.bfloat16), w2_ref[...],
                 preferred_element_type=jnp.float32)
    h3 = jnp.maximum(h3 + b3_ref[...], 0.0)   # (tb, H2) f32

    # --- fc4, emitted lane-dense ---------------------------------------------
    # (8, H2) x (tb, H2)^T on the MXU: the Q values for the whole tile land
    # along the lanes of row 0, so the (1, tb) store is unmasked and no
    # (tb,1)->(1,tb) relayout is needed.  K=30, N=tb: only a few % of the
    # pushes of the two main matmuls.  Rows 1..7 of the LHS are zero padding.
    q = jax.lax.dot_general(w4_ref[...], h3.astype(jnp.bfloat16),
                            dimension_numbers=(((1,), (1,)), ((), ())),
                            preferred_element_type=jnp.float32)  # (8, tb)
    out_ref[...] = (q[0:1, :] + b4_ref[0, 0]).astype(out_ref.dtype)


def _round_up(n, m):
    return ((n + m - 1) // m) * m


def critic_forward(x, a, packed, *, max_tile=MAX_BATCH_TILE):
    """x: [B, state_size], a: [B, action_size] -> [B, 1] float32."""
    B = x.shape[0]
    H1, H2 = HIDDEN1_UNITS, HIDDEN2_UNITS
    HTOT = H1 + H2

    # Single packed input; bf16 halves input DMA bytes and is MXU-native.
    xa = jnp.concatenate([x, a], axis=1).astype(jnp.bfloat16)
    SA = xa.shape[1]

    # Batch tiling: pad only to a multiple of 8 (never to a full max tile) and
    # keep >=2 grid steps when possible (v7x megacore).
    b8 = _round_up(B, 8)
    num_tiles = max(MIN_GRID_TILES, pl.cdiv(b8, max_tile))
    tb = _round_up(pl.cdiv(b8, num_tiles), 8)
    num_tiles = pl.cdiv(b8, tb)
    b_pad = num_tiles * tb
    if b_pad != B:
        xa = jnp.pad(xa, ((0, b_pad - B), (0, 0)))

    def resident(shape):
        # Full-shape block, same block index every step -> stays VMEM-resident.
        return pl.BlockSpec(shape, lambda i: (0, 0))

    out = pl.pallas_call(
        _critic_kernel,
        # Lane-dense output slab: one (1, tb) row per grid step.
        out_shape=jax.ShapeDtypeStruct((num_tiles, 1, tb), jnp.float32),
        grid=(num_tiles,),
        in_specs=[
            pl.BlockSpec(memory_space=pltpu.MemorySpace.SMEM),  # b4 scalar
            pl.BlockSpec((tb, SA), lambda i: (i, 0)),           # [x|a] tile
            resident((SA, HTOT)),                               # W_in
            resident((1, HTOT)),                                # [b1 | 0]
            resident((HTOT, H2)),                               # [Wx' ; I]
            resident((1, H2)),                                  # b3'
            resident((8, H2)),                                  # w4 rows
        ],
        out_specs=pl.BlockSpec((None, 1, tb), lambda i: (i, 0, 0)),
        compiler_params=pltpu.CompilerParams(
            dimension_semantics=("parallel",),
            vmem_limit_bytes=48 * 1024 * 1024),
    )(
        packed["b4"], xa,
        packed["w_in"], packed["b1"], packed["w2"], packed["b3"], packed["w4"],
    )
    return out.reshape(-1, 1)[:B]


def init_params(key, state_size, action_size):
    """torch.nn.Linear-style init (U(-1/sqrt(fan_in), +)); weights stored [in, out]."""
    def linear(key, fan_in, fan_out):
        kw, kb = jax.random.split(key)
        bound = 1.0 / jnp.sqrt(fan_in)
        w = jax.random.uniform(kw, (fan_in, fan_out), jnp.float32, -bound, bound)
        b = jax.random.uniform(kb, (1, fan_out), jnp.float32, -bound, bound)
        return w, b

    k1, k21, k22, k3, k4 = jax.random.split(key, 5)
    w1, b1 = linear(k1, state_size, HIDDEN1_UNITS)
    w21, b21 = linear(k21, HIDDEN1_UNITS, HIDDEN2_UNITS)
    w22, b22 = linear(k22, action_size, HIDDEN2_UNITS)
    w3, b3 = linear(k3, 2 * HIDDEN2_UNITS, HIDDEN2_UNITS)
    w4, b4 = linear(k4, HIDDEN2_UNITS, 1)
    return dict(w1=w1, b1=b1, w21=w21, b21=b21, w22=w22, b22=b22,
                w3=w3, b3=b3, w4=w4, b4=b4)


def pack_params(p):
    """Host-side algebraic fold + block-diagonal packing (done once)."""
    H1, H2 = HIDDEN1_UNITS, HIDDEN2_UNITS
    S = p["w1"].shape[0]
    A = p["w22"].shape[0]

    w3x, w3a = p["w3"][:H2, :], p["w3"][H2:, :]
    wx = p["w21"] @ w3x                                   # (H1, H2)
    wa = p["w22"] @ w3a                                   # (A,  H2)
    b3 = p["b21"] @ w3x + p["b22"] @ w3a + p["b3"]        # (1,  H2)

    # Block-diagonal input weights: [x|a] @ [[W1, 0], [0, Wa']] = [x@W1 | a@Wa'].
    w_in = jnp.zeros((S + A, H1 + H2), jnp.float32)
    w_in = w_in.at[:S, :H1].set(p["w1"])
    w_in = w_in.at[S:, H1:].set(wa)
    b1_ext = jnp.concatenate([p["b1"], jnp.zeros((1, H2), jnp.float32)], axis=1)

    # Second matmul: fc21@fc3-state block stacked on an identity that carries
    # the action-path term through unchanged.
    w2 = jnp.concatenate([wx, jnp.eye(H2, dtype=jnp.float32)], axis=0)  # (H1+H2, H2)

    # fc4 weights padded to 8 sublanes (row 0 = w4^T) for the lane-dense MXU dot.
    w4_pad = jnp.zeros((8, H2), jnp.float32).at[0, :].set(p["w4"][:, 0])

    return {
        "w_in": w_in.astype(jnp.bfloat16),
        "b1": b1_ext,                        # f32 (VPU math stays f32)
        "w2": w2.astype(jnp.bfloat16),
        "b3": b3,                            # f32
        "w4": w4_pad.astype(jnp.bfloat16),
        "b4": p["b4"].reshape(1, 1),         # f32 scalar, lives in SMEM
    }


def critic_reference(x, a, p):
    """Pure-JAX f32 reference matching the original (unfolded) torch forward."""
    h1 = jnp.maximum(x @ p["w1"] + p["b1"], 0.0)
    hx = h1 @ p["w21"] + p["b21"]
    ha = a @ p["w22"] + p["b22"]
    cat = jnp.concatenate([hx, ha], axis=1)
    h3 = jnp.maximum(cat @ p["w3"] + p["b3"], 0.0)
    return h3 @ p["w4"] + p["b4"]


if __name__ == "__main__":
    state_size, action_size, batch = 8, 4, 12   # batch=12 exercises multi-tile + padding

    key = jax.random.PRNGKey(0)
    kx, ka, kp = jax.random.split(key, 3)
    x = jax.random.normal(kx, (batch, state_size), jnp.float32)
    a = jax.random.normal(ka, (batch, action_size), jnp.float32)

    params = init_params(kp, state_size, action_size)
    packed = pack_params(params)

    out = critic_forward(x, a, packed)
    out = jax.block_until_ready(out)

    ref = critic_reference(x, a, params)
    assert out.shape == (batch, 1)
    # bf16 MXU operands -> tolerance loosened vs the f32 reference (per review).
    assert jnp.allclose(out, ref, atol=2e-2, rtol=2e-2), "mismatch vs reference"

    print("KERNEL_OK")
</pallas_src>

<mosaic_0001>
module attributes {stable_mosaic.version = 11 : i64} {
  func.func @_critic_kernel(%arg0: i32, %arg1: memref<1x1xf32, #tpu.memory_space<smem>>, %arg2: memref<8x12xbf16, #tpu.memory_space<vmem>>, %arg3: memref<12x80xbf16, #tpu.memory_space<vmem>>, %arg4: memref<1x80xf32, #tpu.memory_space<vmem>>, %arg5: memref<80x30xbf16, #tpu.memory_space<vmem>>, %arg6: memref<1x30xf32, #tpu.memory_space<vmem>>, %arg7: memref<8x30xbf16, #tpu.memory_space<vmem>>, %arg8: memref<1x1x8xf32, #tpu.memory_space<vmem>>) attributes {dimension_semantics = [#tpu.dimension_semantics<parallel>], iteration_bounds = array<i64: 2>, scalar_prefetch = 0 : i64, scratch_operands = 0 : i64, tpu.core_type = #tpu.core_type<tc>, window_params = [{transform_indices = @transform_0, window_bounds = array<i64: 1, 1>}, {transform_indices = @transform_1, window_bounds = array<i64: 8, 12>}, {pipeline_mode = #tpu.pipeline_mode<synchronous>, transform_indices = @transform_2, window_bounds = array<i64: 12, 80>}, {pipeline_mode = #tpu.pipeline_mode<synchronous>, transform_indices = @transform_3, window_bounds = array<i64: 1, 80>}, {pipeline_mode = #tpu.pipeline_mode<synchronous>, transform_indices = @transform_4, window_bounds = array<i64: 80, 30>}, {pipeline_mode = #tpu.pipeline_mode<synchronous>, transform_indices = @transform_5, window_bounds = array<i64: 1, 30>}, {pipeline_mode = #tpu.pipeline_mode<synchronous>, transform_indices = @transform_6, window_bounds = array<i64: 8, 30>}, {transform_indices = @transform_7, window_bounds = array<i64: 1, 1, 8>}]} {
    %c0 = arith.constant 0 : index
    %c0_0 = arith.constant 0 : index
    %0 = vector.load %arg2[%c0, %c0_0] : memref<8x12xbf16, #tpu.memory_space<vmem>>, vector<8x12xbf16>
    %c0_1 = arith.constant 0 : index
    %c0_2 = arith.constant 0 : index
    %1 = vector.load %arg3[%c0_1, %c0_2] : memref<12x80xbf16, #tpu.memory_space<vmem>>, vector<12x80xbf16>
    %cst = arith.constant dense<0.000000e+00> : vector<8x80xf32>
    %2 = tpu.matmul %0, %1, %cst {dimension_numbers = #tpu.dot_dimension_numbers<[1], [0], [0], [1], [0, 0, 1, 1], [], []>} : vector<8x12xbf16>, vector<12x80xbf16>, vector<8x80xf32> -> vector<8x80xf32>
    %c0_3 = arith.constant 0 : index
    %c0_4 = arith.constant 0 : index
    %3 = vector.load %arg4[%c0_3, %c0_4] : memref<1x80xf32, #tpu.memory_space<vmem>>, vector<1x80xf32>
    %4 = vector.broadcast %3 : vector<1x80xf32> to vector<8x80xf32>
    %5 = arith.addf %2, %4 : vector<8x80xf32>
    %6 = tpu.iota {dimensions = array<i32: 1>} : vector<8x80xi32>
    %c50_i32 = arith.constant 50 : i32
    %7 = vector.broadcast %c50_i32 : i32 to vector<8x80xi32>
    %8 = arith.cmpi slt, %6, %7 : vector<8x80xi32>
    %cst_5 = arith.constant 0.000000e+00 : f32
    %9 = vector.broadcast %cst_5 : f32 to vector<8x80xf32>
    %10 = arith.maximumf %5, %9 : vector<8x80xf32>
    %11 = arith.select %8, %10, %5 : vector<8x80xi1>, vector<8x80xf32>
    %12 = arith.truncf %11 : vector<8x80xf32> to vector<8x80xbf16>
    %c0_6 = arith.constant 0 : index
    %c0_7 = arith.constant 0 : index
    %13 = vector.load %arg5[%c0_6, %c0_7] : memref<80x30xbf16, #tpu.memory_space<vmem>>, vector<80x30xbf16>
    %cst_8 = arith.constant dense<0.000000e+00> : vector<8x30xf32>
    %14 = tpu.matmul %12, %13, %cst_8 {dimension_numbers = #tpu.dot_dimension_numbers<[1], [0], [0], [1], [0, 0, 1, 1], [], []>} : vector<8x80xbf16>, vector<80x30xbf16>, vector<8x30xf32> -> vector<8x30xf32>
    %c0_9 = arith.constant 0 : index
    %c0_10 = arith.constant 0 : index
    %15 = vector.load %arg6[%c0_9, %c0_10] : memref<1x30xf32, #tpu.memory_space<vmem>>, vector<1x30xf32>
    %16 = vector.broadcast %15 : vector<1x30xf32> to vector<8x30xf32>
    %17 = arith.addf %14, %16 : vector<8x30xf32>
    %cst_11 = arith.constant 0.000000e+00 : f32
    %18 = vector.broadcast %cst_11 : f32 to vector<8x30xf32>
    %19 = arith.maximumf %17, %18 : vector<8x30xf32>
    %c0_12 = arith.constant 0 : index
    %c0_13 = arith.constant 0 : index
    %20 = vector.load %arg7[%c0_12, %c0_13] : memref<8x30xbf16, #tpu.memory_space<vmem>>, vector<8x30xbf16>
    %21 = arith.truncf %19 : vector<8x30xf32> to vector<8x30xbf16>
    %cst_14 = arith.constant dense<0.000000e+00> : vector<8x8xf32>
    %22 = tpu.matmul %20, %21, %cst_14 {dimension_numbers = #tpu.dot_dimension_numbers<[1], [1], [0], [0], [0, 0, 1, 0], [], []>} : vector<8x30xbf16>, vector<8x30xbf16>, vector<8x8xf32> -> vector<8x8xf32>
    %23 = vector.extract_strided_slice %22 {offsets = [0, 0], sizes = [1, 8], strides = [1, 1]} : vector<8x8xf32> to vector<1x8xf32>
    %c0_15 = arith.constant 0 : index
    %c0_16 = arith.constant 0 : index
    %24 = memref.load %arg1[%c0_15, %c0_16] : memref<1x1xf32, #tpu.memory_space<smem>>
    %25 = vector.broadcast %24 : f32 to vector<1x8xf32>
    %26 = arith.addf %23, %25 : vector<1x8xf32>
    %c0_17 = arith.constant 0 : index
    %c0_18 = arith.constant 0 : index
    %c0_19 = arith.constant 0 : index
    %27 = vector.load %arg8[%c0_17, %c0_18, %c0_19] : memref<1x1x8xf32, #tpu.memory_space<vmem>>, vector<1x1x8xf32>
    %28 = vector.shape_cast %27 : vector<1x1x8xf32> to vector<1x8xf32>
    %29 = vector.shape_cast %26 : vector<1x8xf32> to vector<1x1x8xf32>
    tpu.vector_store %arg8[%c0_17, %c0_18, %c0_19], %29 {strides = array<i32>} : memref<1x1x8xf32, #tpu.memory_space<vmem>>, vector<1x1x8xf32>,
    return
  }
  func.func @transform_0(%arg0: i32) -> (i32, i32) {
    %c0_i32 = arith.constant 0 : i32
    %c0_i32_0 = arith.constant 0 : i32
    %c0_i32_1 = arith.constant 0 : i32
    return %c0_i32, %c0_i32_0 : i32, i32
  }
  func.func @transform_1(%arg0: i32) -> (i32, i32) {
    %c0_i32 = arith.constant 0 : i32
    %c0_i32_0 = arith.constant 0 : i32
    return %arg0, %c0_i32 : i32, i32
  }
  func.func @transform_2(%arg0: i32) -> (i32, i32) {
    %c0_i32 = arith.constant 0 : i32
    %c0_i32_0 = arith.constant 0 : i32
    %c0_i32_1 = arith.constant 0 : i32
    return %c0_i32, %c0_i32_0 : i32, i32
  }
  func.func @transform_3(%arg0: i32) -> (i32, i32) {
    %c0_i32 = arith.constant 0 : i32
    %c0_i32_0 = arith.constant 0 : i32
    %c0_i32_1 = arith.constant 0 : i32
    return %c0_i32, %c0_i32_0 : i32, i32
  }
  func.func @transform_4(%arg0: i32) -> (i32, i32) {
    %c0_i32 = arith.constant 0 : i32
    %c0_i32_0 = arith.constant 0 : i32
    %c0_i32_1 = arith.constant 0 : i32
    return %c0_i32, %c0_i32_0 : i32, i32
  }
  func.func @transform_5(%arg0: i32) -> (i32, i32) {
    %c0_i32 = arith.constant 0 : i32
    %c0_i32_0 = arith.constant 0 : i32
    %c0_i32_1 = arith.constant 0 : i32
    return %c0_i32, %c0_i32_0 : i32, i32
  }
  func.func @transform_6(%arg0: i32) -> (i32, i32) {
    %c0_i32 = arith.constant 0 : i32
    %c0_i32_0 = arith.constant 0 : i32
    %c0_i32_1 = arith.constant 0 : i32
    return %c0_i32, %c0_i32_0 : i32, i32
  }
  func.func @transform_7(%arg0: i32) -> (i32, i32, i32) {
    %c0_i32 = arith.constant 0 : i32
    %c0_i32_0 = arith.constant 0 : i32
    %c0_i32_1 = arith.constant 0 : i32
    return %arg0, %c0_i32, %c0_i32_0 : i32, i32, i32
  }
}

</mosaic_0001>

<llo_original>
// kernel: tpu_custom_call.1
$region0: #{tpu_custom_call.1}
  #allocation0 [shape = 'u32[]', space=smem, size = 0x4, offset = 0x4, fixed_abs, tag = 'smem constant byte address 0x4 - core index']
  #allocation1 [shape = 'u32[144,128]{1,0:T(1,128)}', space=vmem, size = 0x12000, scoped, tag = 'internal scratch']
  #allocation2 [shape = 'f32[1,1]{1,0:T(1,128)S(6)}', space=smem, size = 0x200, scoped, tag = 'scoped memory for tpu_custom_call.1']
  %s0 = inlined_call_operand.<no memory space> [shape: f32[1,1], index: 0, kind: input, shape index: {}]
  %s1 = inlined_call_operand.vmem [shape: bf16[16,12], index: 1, kind: input, shape index: {}]
  %s2 = inlined_call_operand.vmem [shape: bf16[12,80], index: 2, kind: input, shape index: {}]
  %s3 = inlined_call_operand.vmem [shape: f32[1,80], index: 3, kind: input, shape index: {}]
  %s4 = inlined_call_operand.vmem [shape: bf16[80,30], index: 4, kind: input, shape index: {}]
  %s5 = inlined_call_operand.vmem [shape: f32[1,30], index: 5, kind: input, shape index: {}]
  %s6 = inlined_call_operand.vmem [shape: bf16[8,30], index: 6, kind: input, shape index: {}]
  %s7 = inlined_call_operand.hbm [shape: f32[2,1,8], index: 7, kind: output, shape index: {}]
  %s8 = sld [smem:[#allocation0]]
  $region61: #{tpu_custom_call.1} parent=0
    _
  %s10 = ssub.s32 1, %s8
  %s11 = scalar_select 0, %s10, %s8
  %12 = sst [smem:[#allocation2]] %s0
  $region1: #{tpu_custom_call.1} parent=0
    #allocation3 [shape = 'u8[1024]{0}', space=vmem, size = 0x400, scoped, tag = 'output window, operand 0']
    #allocation4 [shape = 's32[2]{0}', space=sflag, size = 0x8, scoped, tag = 'scoped memory for tpu_custom_call.1']
    %13 = vsyncpa [#allocation4], 0
    %s14 = scalar_lea.sflag [#allocation4], 1
    %15 = vsyncpa %s14, 0
    loop: start=0, step=1, limit=4
    $region2: #{tpu_custom_call.1} parent=1 // loop_pre_header
      _
    $region3: #{tpu_custom_call.1} parent=1 // loop_header
      %s17 = sphi 0, %s21
      %p18 = scmp.ge.s32.totalorder %s17, 4
      %s25 = sphi 0, %s25
      %s27 = sphi 0, %s25
      %s28 = sphi 0, %s27
      %s42 = sphi 0, %s28
      %s48 = sphi 0, %s50
      %s51 = sphi 0, %s48
      %s52 = sphi 0, %s51
      %s68 = sphi 0, %s52
      %s72 = sphi 0, %s72
      %s74 = sphi 0, %s72
      %s75 = sphi 0, %s74
      %s89 = sphi 0, %s75
      %s93 = sphi 0, %s93
      %s95 = sphi 0, %s93
      %s96 = sphi 0, %s95
      %s110 = sphi 0, %s96
      %s114 = sphi 0, %s114
      %s116 = sphi 0, %s114
      %s117 = sphi 0, %s116
      %s131 = sphi 0, %s117
      %s135 = sphi 0, %s135
      %s137 = sphi 0, %s135
      %s138 = sphi 0, %s137
      %s152 = sphi 0, %s138
      %s156 = sphi 0, %s156
      %s158 = sphi 0, %s156
      %s159 = sphi 0, %s158
      %s173 = sphi 0, %s159
      %s179 = sphi 0, %s181
      %s182 = sphi 0, %s179
      %s183 = sphi 0, %s182
      %s199 = sphi 0, %s183
    $region4: #{tpu_custom_call.1} parent=1 // loop_header_branch
      %20 = sbr.rel (%p18) target = $region8
    $region5: #{tpu_custom_call.1} parent=1 // loop_body
      %s22 = ssub.s32 %s17, 1
      %s23 = ssub.s32 %s17, 2
      %s24 = sadd.s32 %s17, 1
      %s26 = sadd.s32 %s25, 1
      %p29 = scmp.eq.s32.totalorder %s17, 1
      %p30 = scmp.ne.s32.totalorder %s25, %s27
      %p31 = scmp.eq.s32.totalorder %s17, 0
      %p32 = por %p30, %p31
      %p33 = scmp.ne.s32.totalorder %s25, %s27
      %p34 = scmp.eq.s32.totalorder %s22, 1
      %p35 = por %p33, %p34
      %p36 = scmp.ne.s32.totalorder %s27, %s28
      %p37 = scmp.eq.s32.totalorder %s22, 0
      %p38 = por %p36, %p37
      %p39 = scmp.ne.s32.totalorder %s27, %s28
      %p40 = scmp.eq.s32.totalorder %s23, 1
      %p41 = por %p39, %p40
      %p43 = scmp.ne.s32.totalorder %s28, %s42
      %p44 = scmp.eq.s32.totalorder %s23, 0
      %p45 = por %p43, %p44
      %s46 = ssub.s32 %s17, %s24
      %p47 = scmp.eq.s32.totalorder %s46, 0
      %s49 = sadd.s32 %s48, 1
      %s50 = scalar_select %p47, %s48, %s49
      %p53 = pneg %p47
      %p54 = scmp.eq.s32.totalorder %s17, 1
      %p55 = por %p53, %p54
      %p56 = scmp.ne.s32.totalorder %s48, %s51
      %p57 = scmp.eq.s32.totalorder %s17, 0
      %p58 = por %p56, %p57
      %p59 = scmp.ne.s32.totalorder %s48, %s51
      %p60 = scmp.eq.s32.totalorder %s22, 1
      %p61 = por %p59, %p60
      %p62 = scmp.ne.s32.totalorder %s51, %s52
      %p63 = scmp.eq.s32.totalorder %s22, 0
      %p64 = por %p62, %p63
      %p65 = scmp.ne.s32.totalorder %s51, %s52
      %p66 = scmp.eq.s32.totalorder %s23, 1
      %p67 = por %p65, %p66
      %p69 = scmp.ne.s32.totalorder %s52, %s68
      %p70 = scmp.eq.s32.totalorder %s23, 0
      %p71 = por %p69, %p70
      %s73 = sadd.s32 %s72, 1
      %p76 = scmp.eq.s32.totalorder %s17, 1
      %p77 = scmp.ne.s32.totalorder %s72, %s74
      %p78 = scmp.eq.s32.totalorder %s17, 0
      %p79 = por %p77, %p78
      %p80 = scmp.ne.s32.totalorder %s72, %s74
      %p81 = scmp.eq.s32.totalorder %s22, 1
      %p82 = por %p80, %p81
      %p83 = scmp.ne.s32.totalorder %s74, %s75
      %p84 = scmp.eq.s32.totalorder %s22, 0
      %p85 = por %p83, %p84
      %p86 = scmp.ne.s32.totalorder %s74, %s75
      %p87 = scmp.eq.s32.totalorder %s23, 1
      %p88 = por %p86, %p87
      %p90 = scmp.ne.s32.totalorder %s75, %s89
      %p91 = scmp.eq.s32.totalorder %s23, 0
      %p92 = por %p90, %p91
      %s94 = sadd.s32 %s93, 1
      %p97 = scmp.eq.s32.totalorder %s17, 1
      %p98 = scmp.ne.s32.totalorder %s93, %s95
      %p99 = scmp.eq.s32.totalorder %s17, 0
      %p100 = por %p98, %p99
      %p101 = scmp.ne.s32.totalorder %s93, %s95
      %p102 = scmp.eq.s32.totalorder %s22, 1
      %p103 = por %p101, %p102
      %p104 = scmp.ne.s32.totalorder %s95, %s96
      %p105 = scmp.eq.s32.totalorder %s22, 0
      %p106 = por %p104, %p105
      %p107 = scmp.ne.s32.totalorder %s95, %s96
      %p108 = scmp.eq.s32.totalorder %s23, 1
      %p109 = por %p107, %p108
      %p111 = scmp.ne.s32.totalorder %s96, %s110
      %p112 = scmp.eq.s32.totalorder %s23, 0
      %p113 = por %p111, %p112
      %s115 = sadd.s32 %s114, 1
      %p118 = scmp.eq.s32.totalorder %s17, 1
      %p119 = scmp.ne.s32.totalorder %s114, %s116
      %p120 = scmp.eq.s32.totalorder %s17, 0
      %p121 = por %p119, %p120
      %p122 = scmp.ne.s32.totalorder %s114, %s116
      %p123 = scmp.eq.s32.totalorder %s22, 1
      %p124 = por %p122, %p123
      %p125 = scmp.ne.s32.totalorder %s116, %s117
      %p126 = scmp.eq.s32.totalorder %s22, 0
      %p127 = por %p125, %p126
      %p128 = scmp.ne.s32.totalorder %s116, %s117
      %p129 = scmp.eq.s32.totalorder %s23, 1
      %p130 = por %p128, %p129
      %p132 = scmp.ne.s32.totalorder %s117, %s131
      %p133 = scmp.eq.s32.totalorder %s23, 0
      %p134 = por %p132, %p133
      %s136 = sadd.s32 %s135, 1
      %p139 = scmp.eq.s32.totalorder %s17, 1
      %p140 = scmp.ne.s32.totalorder %s135, %s137
      %p141 = scmp.eq.s32.totalorder %s17, 0
      %p142 = por %p140, %p141
      %p143 = scmp.ne.s32.totalorder %s135, %s137
      %p144 = scmp.eq.s32.totalorder %s22, 1
      %p145 = por %p143, %p144
      %p146 = scmp.ne.s32.totalorder %s137, %s138
      %p147 = scmp.eq.s32.totalorder %s22, 0
      %p148 = por %p146, %p147
      %p149 = scmp.ne.s32.totalorder %s137, %s138
      %p150 = scmp.eq.s32.totalorder %s23, 1
      %p151 = por %p149, %p150
      %p153 = scmp.ne.s32.totalorder %s138, %s152
      %p154 = scmp.eq.s32.totalorder %s23, 0
      %p155 = por %p153, %p154
      %s157 = sadd.s32 %s156, 1
      %p160 = scmp.eq.s32.totalorder %s17, 1
      %p161 = scmp.ne.s32.totalorder %s156, %s158
      %p162 = scmp.eq.s32.totalorder %s17, 0
      %p163 = por %p161, %p162
      %p164 = scmp.ne.s32.totalorder %s156, %s158
      %p165 = scmp.eq.s32.totalorder %s22, 1
      %p166 = por %p164, %p165
      %p167 = scmp.ne.s32.totalorder %s158, %s159
      %p168 = scmp.eq.s32.totalorder %s22, 0
      %p169 = por %p167, %p168
      %p170 = scmp.ne.s32.totalorder %s158, %s159
      %p171 = scmp.eq.s32.totalorder %s23, 1
      %p172 = por %p170, %p171
      %p174 = scmp.ne.s32.totalorder %s159, %s173
      %p175 = scmp.eq.s32.totalorder %s23, 0
      %p176 = por %p174, %p175
      %s177 = ssub.s32 %s17, %s24
      %p178 = scmp.eq.s32.totalorder %s177, 0
      %s180 = sadd.s32 %s179, 1
      %s181 = scalar_select %p178, %s179, %s180
      %p184 = pneg %p178
      %p185 = scmp.eq.s32.totalorder %s17, 1
      %p186 = por %p184, %p185
      %p187 = scmp.ne.s32.totalorder %s179, %s182
      %p188 = scmp.eq.s32.totalorder %s17, 0
      %p189 = por %p187, %p188
      %p190 = scmp.ne.s32.totalorder %s179, %s182
      %p191 = scmp.eq.s32.totalorder %s22, 1
      %p192 = por %p190, %p191
      %p193 = scmp.ne.s32.totalorder %s182, %s183
      %p194 = scmp.eq.s32.totalorder %s22, 0
      %p195 = por %p193, %p194
      %p196 = scmp.ne.s32.totalorder %s182, %s183
      %p197 = scmp.eq.s32.totalorder %s23, 1
      %p198 = por %p196, %p197
      %p200 = scmp.ne.s32.totalorder %s183, %s199
      %p201 = scmp.eq.s32.totalorder %s23, 0
      %p202 = por %p200, %p201
      %p203 = scmp.le.s32.totalorder 1, %s17
      %p204 = scmp.lt.s32.totalorder %s17, 3
      %p205 = pnand %p203, %p204
      %p206 = pneg %p205
      // Predicated region
      $region9: #{tpu_custom_call.1} parent=5 // pred_check
        _
      $region10: #{tpu_custom_call.1} parent=5 // pred_check_branch
        %208 = sbr.rel (%p205) target = $region12
      $region11: #{tpu_custom_call.1} parent=5 // pred_region
        %s209 = ssub.s32 %s17, 1
        // Predicated region
        $region13: #{tpu_custom_call.1} parent=11 // pred_check
          %p210 = pneg %p38
        $region14: #{tpu_custom_call.1} parent=11 // pred_check_branch
          %212 = sbr.rel (%p210) target = $region16
        $region15: #{tpu_custom_call.1} parent=11 // pred_region
          _
        $region16: #{tpu_custom_call.1} parent=11 // pred_fallthru
          _
        // Predicated region
        $region17: #{tpu_custom_call.1} parent=11 // pred_check
          %p213 = pneg %p85
        $region18: #{tpu_custom_call.1} parent=11 // pred_check_branch
          %215 = sbr.rel (%p213) target = $region20
        $region19: #{tpu_custom_call.1} parent=11 // pred_region
          _
        $region20: #{tpu_custom_call.1} parent=11 // pred_fallthru
          _
        // Predicated region
        $region21: #{tpu_custom_call.1} parent=11 // pred_check
          %p216 = pneg %p106
        $region22: #{tpu_custom_call.1} parent=11 // pred_check_branch
          %218 = sbr.rel (%p216) target = $region24
        $region23: #{tpu_custom_call.1} parent=11 // pred_region
          _
        $region24: #{tpu_custom_call.1} parent=11 // pred_fallthru
          _
        // Predicated region
        $region25: #{tpu_custom_call.1} parent=11 // pred_check
          %p219 = pneg %p127
        $region26: #{tpu_custom_call.1} parent=11 // pred_check_branch
          %221 = sbr.rel (%p219) target = $region28
        $region27: #{tpu_custom_call.1} parent=11 // pred_region
          _
        $region28: #{tpu_custom_call.1} parent=11 // pred_fallthru
          _
        // Predicated region
        $region29: #{tpu_custom_call.1} parent=11 // pred_check
          %p222 = pneg %p148
        $region30: #{tpu_custom_call.1} parent=11 // pred_check_branch
          %224 = sbr.rel (%p222) target = $region32
        $region31: #{tpu_custom_call.1} parent=11 // pred_region
          _
        $region32: #{tpu_custom_call.1} parent=11 // pred_fallthru
          _
        // Predicated region
        $region33: #{tpu_custom_call.1} parent=11 // pred_check
          %p225 = pneg %p169
        $region34: #{tpu_custom_call.1} parent=11 // pred_check_branch
          %227 = sbr.rel (%p225) target = $region36
        $region35: #{tpu_custom_call.1} parent=11 // pred_region
          _
        $region36: #{tpu_custom_call.1} parent=11 // pred_fallthru
          _
      $region12: #{tpu_custom_call.1} parent=5 // pred_fallthru
        _
      %p228 = scmp.lt.s32.totalorder %s17, 2
      // Predicated region
      $region37: #{tpu_custom_call.1} parent=5 // pred_check
        %p229 = pneg %p228
      $region38: #{tpu_custom_call.1} parent=5 // pred_check_branch
        %231 = sbr.rel (%p229) target = $region40
      $region39: #{tpu_custom_call.1} parent=5 // pred_region
        // Predicated region
        $region41: #{tpu_custom_call.1} parent=39 // pred_check
          %p232 = pneg %p58
        $region42: #{tpu_custom_call.1} parent=39 // pred_check_branch
          %234 = sbr.rel (%p232) target = $region44
        $region43: #{tpu_custom_call.1} parent=39 // pred_region
          %p235 = scmp.lt.s32.totalorder %s17, 1
          %s236 = scalar_select %p235, %s17, 1
          %s237 = smul.addr %s236, 4
          %s238 = scalar_lea.vmem %s1, %s237
        $region44: #{tpu_custom_call.1} parent=39 // pred_fallthru
          _
      $region40: #{tpu_custom_call.1} parent=5 // pred_fallthru
        _
      %p239 = scmp.le.s32.totalorder 1, %s17
      %p240 = scmp.lt.s32.totalorder %s17, 3
      %p241 = pnand %p239, %p240
      %p242 = pneg %p241
      // Predicated region
      $region45: #{tpu_custom_call.1} parent=5 // pred_check
        _
      $region46: #{tpu_custom_call.1} parent=5 // pred_check_branch
        %244 = sbr.rel (%p241) target = $region48
      $region47: #{tpu_custom_call.1} parent=5 // pred_region
        %s245 = ssub.s32 %s17, 1
        %p246 = pneg %p38
        %p247 = pneg %p35
        %p248 = scmp.lt.s32.totalorder %s22, 1
        %s249 = scalar_select %p248, %s22, 1
        %s250 = smul.addr %s249, 4
        %s251 = scalar_lea.vmem %s1, %s250
        %p252 = pneg %p64
        %p253 = pneg %p61
        %p254 = pneg %p85
        %p255 = pneg %p82
        %p256 = pneg %p106
        %p257 = pneg %p103
        %p258 = pneg %p127
        %p259 = pneg %p124
        %p260 = pneg %p148
        %p261 = pneg %p145
        %p262 = pneg %p169
        %p263 = pneg %p166
        %p264 = pneg %p195
        %p265 = pneg %p192
        %s266 = sand.u32 %s182, 1
        %s267 = scalar_lea.sflag [#allocation4], %s266
        %s268 = sand.u32 %s182, 1
        %s269 = scalar_lea.vmem [#allocation3], %s268
        %p270 = scmp.lt.s32.totalorder %s22, 1
        %s271 = scalar_select %p270, %s22, 1
        %s272 = smul.addr %s271, 4
        %s273 = scalar_lea.vmem %s1, %s272
        %v275 = vld [vmem:[%s273] sm:$0xf]
        %v276 = vld [vmem:[%s2] sm:$0xf]
        %v277 = vld [vmem:[%s2 + $0x4] sm:$0x3]
        %v278 = vld [vmem:[%s3] sm:$0x1]
        %v280 = vlaneseq
        %v281 = vshrl.u32 %v280, 7
        %v282 = vsub.s32 0, %v281
        %v283 = vrot.slane %v278, %v282
        %v287 = vunpack.c.l.b16 %v276
        %v288 = vunpack.c.l.b16 %v277
        %v289 = vpack.c.b16 %v288, %v287
        %vm290 = vcmask 97280
        %v292 = vsel %vm290, %v275, 0
        %vm294 = vcmask 1045504
        %v296 = vsel %vm294, %v289, 0
        %298 = vmatprep.subr.bf16.mxu0 0
        %299 = vmatpush1.bf16.msra.mxu0 %v296
        %300 = vmatprep.subr.bf16.mxu0 0
        %301 = vmatpush1.bf16.msra.mxu0 0
        %302 = vmatprep.subr.bf16.mxu0 0
        %303 = vmatpush1.bf16.msra.mxu0 0
        %304 = vmatprep.subr.bf16.mxu0 0
        %305 = vmatpush1.bf16.msra.mxu0 0
        %306 = vmatprep.subr.bf16.mxu0 0
        %307 = vmatpush1.bf16.msra.mxu0 0
        %308 = vmatprep.subr.bf16.mxu0 0
        %309 = vmatpush1.bf16.msra.mxu0 0
        %310 = vmatprep.subr.bf16.mxu0 0
        %311 = vmatpush1.bf16.msra.mxu0 0
        %312 = vmatprep.subr.bf16.mxu0 0
        %313 = vmatpush1.bf16.msra.mxu0 0
        %314 = vmatprep.subr.bf16.mxu0 0
        %315 = vmatpush1.bf16.msra.mxu0 0
        %316 = vmatprep.subr.bf16.mxu0 0
        %317 = vmatpush1.bf16.msra.mxu0 0
        %318 = vmatprep.subr.bf16.mxu0 0
        %319 = vmatpush1.bf16.msra.mxu0 0
        %320 = vmatprep.subr.bf16.mxu0 0
        %321 = vmatpush1.bf16.msra.mxu0 0
        %322 = vmatprep.subr.bf16.mxu0 0
        %323 = vmatpush1.bf16.msra.mxu0 0
        %324 = vmatprep.subr.bf16.mxu0 0
        %325 = vmatpush1.bf16.msra.mxu0 0
        %326 = vmatprep.subr.bf16.mxu0 0
        %327 = vmatpush1.bf16.msra.mxu0 0
        %328 = vmatprep.subr.bf16.mxu0 0
        %329 = vmatpush1.bf16.msra.mxu0 0
        %330 = vmatprep.mubr.bf16.mxu0 0
        %331 = vmatmul.mubr.bf16.gmra.mrb[0].mxu0 %v292
        %v332 = vpop.f32.mrb[0].mxu0
        %v333 = vadd.f32 %v283, %v332
        %v334 = vpop.f32.mrb[0].mxu0
        %v335 = vpop.f32.mrb[0].mxu0
        %v336 = vpop.f32.mrb[0].mxu0
        %337 = vdwg.mxu0
        %v338 = vlaneseq
        %v339 = vand.u32 %v338, 127
        %vm340 = vcmp.lt.s32.totalorder %v339, 50
        %v341 = vmax.f32 %v333, 0.0
        %v342 = vsel %vm340, %v341, %v333
        %v343 = vpack.c.bf16 %v342, %v342
        %v344 = vld [vmem:[%s4] sm:$0xf]
        %v345 = vld [vmem:[%s4 + $0x4] sm:$0xf]
        %v346 = vld [vmem:[%s4 + $0x8] sm:$0xf]
        %v347 = vld [vmem:[%s4 + $0xc] sm:$0xf]
        %v348 = vld [vmem:[%s4 + $0x10] sm:$0xf]
        %v349 = vld [vmem:[%s4 + $0x14] sm:$0xf]
        %v350 = vld [vmem:[%s4 + $0x18] sm:$0xf]
        %v351 = vld [vmem:[%s4 + $0x1c] sm:$0xf]
        %v352 = vld [vmem:[%s4 + $0x20] sm:$0xf]
        %v353 = vld [vmem:[%s4 + $0x24] sm:$0xf]
        %v354 = vld [vmem:[%s5] sm:$0x1]
        %v356 = vlaneseq
        %v357 = vshrl.u32 %v356, 7
        %v358 = vsub.s32 0, %v357
        %v359 = vrot.slane %v354, %v358
        %v371 = vunpack.c.l.b16 %v344
        %v372 = vunpack.c.l.b16 %v345
        %v373 = vunpack.c.l.b16 %v346
        %v374 = vunpack.c.l.b16 %v347
        %v375 = vunpack.c.l.b16 %v348
        %v376 = vunpack.c.l.b16 %v349
        %v377 = vunpack.c.l.b16 %v350
        %v378 = vunpack.c.l.b16 %v351
        %v379 = vunpack.c.l.b16 %v352
        %v380 = vunpack.c.l.b16 %v353
        %v381 = vpack.c.b16 %v372, %v371
        %v382 = vpack.c.b16 %v374, %v373
        %v383 = vpack.c.b16 %v376, %v375
        %v384 = vpack.c.b16 %v378, %v377
        %v385 = vpack.c.b16 %v380, %v379
        %vm391 = vcmask 654336
        %v393 = vsel %vm391, %v343, 0
        %395 = vmatprep.subr.bf16.mxu0 0
        %396 = vmatpush1.bf16.msra.mxu0 %v381
        %397 = vmatprep.subr.bf16.mxu0 0
        %398 = vmatpush1.bf16.msra.mxu0 %v382
        %399 = vmatprep.subr.bf16.mxu0 0
        %400 = vmatpush1.bf16.msra.mxu0 %v383
        %401 = vmatprep.subr.bf16.mxu0 0
        %402 = vmatpush1.bf16.msra.mxu0 %v384
        %403 = vmatprep.subr.bf16.mxu0 0
        %404 = vmatpush1.bf16.msra.mxu0 %v385
        %405 = vmatprep.subr.bf16.mxu0 0
        %406 = vmatpush1.bf16.msra.mxu0 0
        %407 = vmatprep.subr.bf16.mxu0 0
        %408 = vmatpush1.bf16.msra.mxu0 0
        %409 = vmatprep.subr.bf16.mxu0 0
        %410 = vmatpush1.bf16.msra.mxu0 0
        %411 = vmatprep.subr.bf16.mxu0 0
        %412 = vmatpush1.bf16.msra.mxu0 0
        %413 = vmatprep.subr.bf16.mxu0 0
        %414 = vmatpush1.bf16.msra.mxu0 0
        %415 = vmatprep.subr.bf16.mxu0 0
        %416 = vmatpush1.bf16.msra.mxu0 0
        %417 = vmatprep.subr.bf16.mxu0 0
        %418 = vmatpush1.bf16.msra.mxu0 0
        %419 = vmatprep.subr.bf16.mxu0 0
        %420 = vmatpush1.bf16.msra.mxu0 0
        %421 = vmatprep.subr.bf16.mxu0 0
        %422 = vmatpush1.bf16.msra.mxu0 0
        %423 = vmatprep.subr.bf16.mxu0 0
        %424 = vmatpush1.bf16.msra.mxu0 0
        %425 = vmatprep.subr.bf16.mxu0 0
        %426 = vmatpush1.bf16.msra.mxu0 0
        %427 = vmatprep.mubr.bf16.mxu0 0
        %428 = vmatmul.mubr.bf16.gmra.mrb[0].mxu0 %v393
        %v429 = vpop.f32.mrb[0].mxu0
        %v430 = vadd.f32 %v359, %v429
        %v431 = vpop.f32.mrb[0].mxu0
        %v432 = vpop.f32.mrb[0].mxu0
        %v433 = vpop.f32.mrb[0].mxu0
        %434 = vdwg.mxu0
        %v435 = vmax.f32 %v430, 0.0
        %v436 = vld [vmem:[%s6] sm:$0xf]
        %v437 = vpack.c.bf16 %v435, %v435
        %vm438 = vcmask 244736
        %v440 = vsel %vm438, %v436, 0
        %v443 = vsel %vm438, %v437, 0
        %445 = vmatprep.subr.bf16.mxu0 0
        %446 = vmatpush1.bf16.xpose.msra.mxu0 %v443
        %447 = vmatprep.subr.bf16.mxu0 0
        %448 = vmatpush1.bf16.xpose.msra.mxu0 0
        %449 = vmatprep.subr.bf16.mxu0 0
        %450 = vmatpush1.bf16.xpose.msra.mxu0 0
        %451 = vmatprep.subr.bf16.mxu0 0
        %452 = vmatpush1.bf16.xpose.msra.mxu0 0
        %453 = vmatprep.subr.bf16.mxu0 0
        %454 = vmatpush1.bf16.xpose.msra.mxu0 0
        %455 = vmatprep.subr.bf16.mxu0 0
        %456 = vmatpush1.bf16.xpose.msra.mxu0 0
        %457 = vmatprep.subr.bf16.mxu0 0
        %458 = vmatpush1.bf16.xpose.msra.mxu0 0
        %459 = vmatprep.subr.bf16.mxu0 0
        %460 = vmatpush1.bf16.xpose.msra.mxu0 0
        %461 = vmatprep.subr.bf16.mxu0 0
        %462 = vmatpush1.bf16.xpose.msra.mxu0 0
        %463 = vmatprep.subr.bf16.mxu0 0
        %464 = vmatpush1.bf16.xpose.msra.mxu0 0
        %465 = vmatprep.subr.bf16.mxu0 0
        %466 = vmatpush1.bf16.xpose.msra.mxu0 0
        %467 = vmatprep.subr.bf16.mxu0 0
        %468 = vmatpush1.bf16.xpose.msra.mxu0 0
        %469 = vmatprep.subr.bf16.mxu0 0
        %470 = vmatpush1.bf16.xpose.msra.mxu0 0
        %471 = vmatprep.subr.bf16.mxu0 0
        %472 = vmatpush1.bf16.xpose.msra.mxu0 0
        %473 = vmatprep.subr.bf16.mxu0 0
        %474 = vmatpush1.bf16.xpose.msra.mxu0 0
        %475 = vmatprep.subr.bf16.mxu0 0
        %476 = vmatpush1.bf16.xpose.msra.mxu0 0
        %477 = vmatprep.mubr.bf16.mxu0 0
        %478 = vmatmul.mubr.bf16.gmra.mrb[0].mxu0 %v440
        %v479 = vpop.f32.mrb[0].mxu0
        %v480 = vadd.f32 0.0, %v479
        %v481 = vpop.f32.mrb[0].mxu0
        %v482 = vpop.f32.mrb[0].mxu0
        %v483 = vpop.f32.mrb[0].mxu0
        %484 = vdwg.mxu0
        %s485 = sld [smem:[#allocation2]]
        %v486 = vstv %s485
        %v487 = vadd.f32 %v480, %v486
        %vm488 = vcmask 57344
        %489 = vst.msk [vmem:[%s269] sm:$0x1] %vm488, %v487
        %s490 = sand.u32 %s182, 1
        %s491 = scalar_lea.sflag [#allocation4], %s490
        %s492 = sand.u32 %s182, 1
        %s493 = scalar_lea.vmem [#allocation3], %s492
        // Predicated region
        $region49: #{tpu_custom_call.1} parent=47 // pred_check
          %p494 = pneg %p192
        $region50: #{tpu_custom_call.1} parent=47 // pred_check_branch
          %496 = sbr.rel (%p494) target = $region52
        $region51: #{tpu_custom_call.1} parent=47 // pred_region
          %s498 = ssub.s32 16, 16
          %499 = vsyncadd %s491, %s498
          %s500 = smul.addr %s22, 16
          %s501 = scalar_lea.hbm %s7, %s500
          %s503 = sshll.u32 %s493, 4
          %s504 = int_to_ptr.vmem [resolvable:$true] %s503
          %506 = dma.vmem_to_hbm [thread:$0]  %s504, 16, %s501, %s491
        $region52: #{tpu_custom_call.1} parent=47 // pred_fallthru
          _
      $region48: #{tpu_custom_call.1} parent=5 // pred_fallthru
        _
      %p507 = scmp.le.s32.totalorder 2, %s17
      // Predicated region
      $region53: #{tpu_custom_call.1} parent=5 // pred_check
        %p508 = pneg %p507
      $region54: #{tpu_custom_call.1} parent=5 // pred_check_branch
        %510 = sbr.rel (%p508) target = $region56
      $region55: #{tpu_custom_call.1} parent=5 // pred_region
        %s511 = ssub.s32 %s17, 2
        // Predicated region
        $region57: #{tpu_custom_call.1} parent=55 // pred_check
          %p512 = pneg %p198
        $region58: #{tpu_custom_call.1} parent=55 // pred_check_branch
          %514 = sbr.rel (%p512) target = $region60
        $region59: #{tpu_custom_call.1} parent=55 // pred_region
          %s515 = sand.u32 %s183, 1
          %s516 = scalar_lea.sflag [#allocation4], %s515
          %s517 = sand.u32 %s183, 1
          %s518 = scalar_lea.vmem [#allocation3], %s517
          %519 = dma.done %s516, 16
        $region60: #{tpu_custom_call.1} parent=55 // pred_fallthru
          _
      $region56: #{tpu_custom_call.1} parent=5 // pred_fallthru
        _
    $region6: #{tpu_custom_call.1} parent=1 // loop_footer
      %s21 = sadd.s32 1, %s17
    $region7: #{tpu_custom_call.1} parent=1 // loop_footer_branch
      %16 = sbr.rel target = $region3
    $region8: #{tpu_custom_call.1} parent=1 // loop_exit
      _
    %520 = vsyncpa [#allocation4], 1
    %s521 = scalar_lea.sflag [#allocation4], 1
    %522 = vsyncpa %s521, 1

</llo_original>
